<compile_context>
chip_gen: v5e
topology: v5e:2x2
jax: 0.10.0
libtpu: 0.0.40
codegen_flags: <defaults>
</compile_context>

<pallas_src>
import math
from functools import partial

import jax
import jax.numpy as jnp
from jax.experimental import pallas as pl
from jax.experimental.pallas import tpu as pltpu


# --------------------------------------------------------------------------- #
# Kernels
# --------------------------------------------------------------------------- #

def _gn_single_pass_kernel(x_ref, gmat_ref, gamma_ref, beta_ref, o_ref, *,
                           inv_count, eps):
    """One grid step = one batch element. x_ref block: (1, R, L)."""
    # --- stats: per-lane sums over the point axis (first read of the block) ---
    xf = x_ref[0].astype(jnp.float32)                       # (R, L)
    s1 = jnp.sum(xf, axis=0, keepdims=True)                 # (1, L)
    s2 = jnp.sum(xf * xf, axis=0, keepdims=True)            # (1, L)
    # One MXU matmul does group-reduce + broadcast-back for both moments.
    g12 = jnp.dot(jnp.concatenate([s1, s2], axis=0), gmat_ref[...],
                  preferred_element_type=jnp.float32)       # (2, L)
    mean = g12[0:1] * inv_count
    var = jnp.maximum(g12[1:2] * inv_count - mean * mean, 0.0)
    rstd = jax.lax.rsqrt(var + eps)                         # EUP
    scale = rstd * gamma_ref[...]                           # (1, L)
    shift = beta_ref[...] - mean * scale                    # (1, L)
    # --- normalize: re-read the block so the f32 copy above is not kept live --
    o_ref[0] = (x_ref[0].astype(jnp.float32) * scale + shift).astype(o_ref.dtype)


def _gn_stats_kernel(x_ref, s_ref):
    """Accumulate per-lane [sum, sum_sq] over N tiles. s_ref block: (1, 2, L)."""
    @pl.when(pl.program_id(1) == 0)
    def _():
        s_ref[...] = jnp.zeros_like(s_ref)
    xf = x_ref[0].astype(jnp.float32)                       # (TN, L)
    s1 = jnp.sum(xf, axis=0, keepdims=True)
    s2 = jnp.sum(xf * xf, axis=0, keepdims=True)
    s_ref[0] += jnp.concatenate([s1, s2], axis=0)


def _gn_normalize_kernel(s_ref, gmat_ref, gamma_ref, beta_ref, x_ref, o_ref, *,
                         inv_count, eps):
    """Normalize one (batch, N-tile) block using precomputed per-lane stats."""
    g12 = jnp.dot(s_ref[0], gmat_ref[...], preferred_element_type=jnp.float32)
    mean = g12[0:1] * inv_count
    var = jnp.maximum(g12[1:2] * inv_count - mean * mean, 0.0)
    rstd = jax.lax.rsqrt(var + eps)
    scale = rstd * gamma_ref[...]
    shift = beta_ref[...] - mean * scale
    o_ref[0] = (x_ref[0].astype(jnp.float32) * scale + shift).astype(o_ref.dtype)


# --------------------------------------------------------------------------- #
# Wrapper
# --------------------------------------------------------------------------- #

def _choose_tile_rows(n_rows, lanes, itemsize, budget_bytes):
    """Largest multiple of 8 that divides n_rows and fits the VMEM budget."""
    per_row = lanes * (4 * itemsize + 8)      # dbl-buffered in+out + f32 temp
    max_rows = max(8, budget_bytes // per_row)
    best = None
    t = 8
    while t <= n_rows:
        if n_rows % t == 0 and t <= max_rows:
            best = t
        t += 8
    return best


def minkowski_group_norm(x, gamma, beta, *, num_groups, eps=1e-5,
                         single_pass_budget_bytes=24 * 2**20,
                         tile_rows=None):
    """x: (B, N, C) dense stand-in for input.decomposed_features (equal-length
    batches). gamma, beta: (C,) GroupNorm affine params. Returns (B*N, C)."""
    B, N, C = x.shape
    assert C % num_groups == 0
    cg = C // num_groups

    # Fold channels into the 128-lane dim (free contiguous reshape): zero
    # padding, zero DMA inflation, lane-dense stores for narrow-channel models.
    if C < 128 and 128 % C == 0 and N % (128 // C) == 0:
        k = 128 // C
    else:
        # lanes = C; if C % 128 != 0 stores are masked, which is hidden under
        # HBM-bound DMA -- still no pad / no extra HBM passes.
        k = 1
    R, L = N // k, k * C
    xr = x.reshape(B, R, L)                          # free (contiguous) reshape

    # Group-membership matrix over the (possibly repeating) lane->channel map.
    lane_chan = jnp.arange(L) % C
    gid = lane_chan // cg
    gmat = (gid[:, None] == gid[None, :]).astype(jnp.float32)       # (L, L)
    gamma_l = gamma.astype(jnp.float32)[lane_chan].reshape(1, L)
    beta_l = beta.astype(jnp.float32)[lane_chan].reshape(1, L)

    inv_count = 1.0 / float(N * cg)
    itemsize = x.dtype.itemsize

    def _vmem_limit(rows):
        est = rows * L * (4 * itemsize + 8) + L * L * 4 + (2 << 20)
        return int(min(48 * 2**20, max(16 * 2**20, est)))

    single_est = R * L * (4 * itemsize + 8) + L * L * 4
    use_two_pass = (single_est > single_pass_budget_bytes) or (tile_rows is not None)
    tn = None
    if use_two_pass:
        tn = tile_rows if tile_rows is not None else _choose_tile_rows(
            R, L, itemsize, budget_bytes=8 * 2**20)
        if tn is None or tn % 8 != 0 or R % tn != 0:
            # TODO(synk): row counts with no multiple-of-8 divisor would need
            # masked partial N tiles; fall back to the single-block path.
            use_two_pass = False

    out_shape = jax.ShapeDtypeStruct((B, R, L), x.dtype)

    if not use_two_pass:
        out = pl.pallas_call(
            partial(_gn_single_pass_kernel, inv_count=inv_count, eps=float(eps)),
            out_shape=out_shape,
            grid_spec=pltpu.PrefetchScalarGridSpec(
                num_scalar_prefetch=0,
                grid=(B,),
                in_specs=[
                    pl.BlockSpec((1, R, L), lambda b: (b, 0, 0)),
                    pl.BlockSpec((L, L), lambda b: (0, 0)),
                    pl.BlockSpec((1, L), lambda b: (0, 0)),
                    pl.BlockSpec((1, L), lambda b: (0, 0)),
                ],
                out_specs=pl.BlockSpec((1, R, L), lambda b: (b, 0, 0)),
            ),
            compiler_params=pltpu.CompilerParams(
                dimension_semantics=("parallel",),
                vmem_limit_bytes=_vmem_limit(R)),
        )(xr, gmat, gamma_l, beta_l)
    else:
        n_tiles = R // tn
        # Pass 1: per-(batch, lane) [sum, sum_sq] accumulated over N tiles.
        stats = pl.pallas_call(
            _gn_stats_kernel,
            out_shape=jax.ShapeDtypeStruct((B, 2, L), jnp.float32),
            grid_spec=pltpu.PrefetchScalarGridSpec(
                num_scalar_prefetch=0,
                grid=(B, n_tiles),
                in_specs=[pl.BlockSpec((1, tn, L), lambda b, n: (b, n, 0))],
                out_specs=pl.BlockSpec((1, 2, L), lambda b, n: (b, 0, 0)),
            ),
            compiler_params=pltpu.CompilerParams(
                dimension_semantics=("parallel", "arbitrary"),
                vmem_limit_bytes=_vmem_limit(tn)),
        )(xr)
        # Pass 2: normalize each (batch, N-tile); fully parallel grid so v7x's
        # two TensorCores always have work even at B == 1.
        out = pl.pallas_call(
            partial(_gn_normalize_kernel, inv_count=inv_count, eps=float(eps)),
            out_shape=out_shape,
            grid_spec=pltpu.PrefetchScalarGridSpec(
                num_scalar_prefetch=0,
                grid=(B, n_tiles),
                in_specs=[
                    pl.BlockSpec((1, 2, L), lambda b, n: (b, 0, 0)),
                    pl.BlockSpec((L, L), lambda b, n: (0, 0)),
                    pl.BlockSpec((1, L), lambda b, n: (0, 0)),
                    pl.BlockSpec((1, L), lambda b, n: (0, 0)),
                    pl.BlockSpec((1, tn, L), lambda b, n: (b, n, 0)),
                ],
                out_specs=pl.BlockSpec((1, tn, L), lambda b, n: (b, n, 0)),
            ),
            compiler_params=pltpu.CompilerParams(
                dimension_semantics=("parallel", "parallel"),
                vmem_limit_bytes=_vmem_limit(tn)),
        )(stats, gmat, gamma_l, beta_l, xr)

    # Free contiguous reshape back to the module's (B*N, C) output layout.
    return out.reshape(B * N, C)


# --------------------------------------------------------------------------- #
# Reference + self-test
# --------------------------------------------------------------------------- #

def _reference(x, gamma, beta, num_groups, eps):
    """Pure-JAX reference matching torch.nn.GroupNorm on (B, C, N)."""
    B, N, C = x.shape
    cg = C // num_groups
    xt = jnp.transpose(x, (0, 2, 1))                        # B C N
    xg = xt.reshape(B, num_groups, cg * N)
    mean = jnp.mean(xg, axis=-1, keepdims=True)
    var = jnp.mean((xg - mean) ** 2, axis=-1, keepdims=True)
    y = (xg - mean) / jnp.sqrt(var + eps)
    y = y.reshape(B, C, N) * gamma[None, :, None] + beta[None, :, None]
    return jnp.transpose(y, (0, 2, 1)).reshape(B * N, C)    # (B N) C


if __name__ == "__main__":
    eps = 1e-5
    key = jax.random.PRNGKey(0)
    kx, kg, kb, kx2 = jax.random.split(key, 4)

    # --- Test 1: small shapes, single-pass path (one block per batch). ---
    B, N, C, G = 2, 16, 32, 4
    x = jax.random.normal(kx, (B, N, C), jnp.float32)
    gamma = 1.0 + 0.1 * jax.random.normal(kg, (C,), jnp.float32)
    beta = 0.1 * jax.random.normal(kb, (C,), jnp.float32)

    out = jax.block_until_ready(
        minkowski_group_norm(x, gamma, beta, num_groups=G, eps=eps))
    ref = _reference(x, gamma, beta, G, eps)
    assert out.shape == (B * N, C)
    assert jnp.allclose(out, ref, atol=1e-4, rtol=1e-4), float(
        jnp.max(jnp.abs(out - ref)))

    # --- Test 2: force the N-tiled two-pass path (large-N / small-VMEM). ---
    B2, N2 = 2, 64
    x2 = jax.random.normal(kx2, (B2, N2, C), jnp.float32)
    out2 = jax.block_until_ready(
        minkowski_group_norm(x2, gamma, beta, num_groups=G, eps=eps,
                             single_pass_budget_bytes=0, tile_rows=8))
    ref2 = _reference(x2, gamma, beta, G, eps)
    assert out2.shape == (B2 * N2, C)
    assert jnp.allclose(out2, ref2, atol=1e-4, rtol=1e-4), float(
        jnp.max(jnp.abs(out2 - ref2)))

    # TODO(synk): variable-length decomposed batches (ragged N per batch) and
    # ME.SparseTensor/TensorField re-wrapping (coordinate-map metadata) are not
    # representable in this dense stand-in.
    print("KERNEL_OK")
</pallas_src>

<mosaic_0001>
module attributes {stable_mosaic.version = 11 : i64} {
  func.func @_gn_single_pass_kernel(%arg0: i32, %arg1: memref<1x4x128xf32, #tpu.memory_space<vmem>>, %arg2: memref<128x128xf32, #tpu.memory_space<vmem>>, %arg3: memref<1x128xf32, #tpu.memory_space<vmem>>, %arg4: memref<1x128xf32, #tpu.memory_space<vmem>>, %arg5: memref<1x4x128xf32, #tpu.memory_space<vmem>>) attributes {dimension_semantics = [#tpu.dimension_semantics<parallel>], iteration_bounds = array<i64: 2>, scalar_prefetch = 0 : i64, scratch_operands = 0 : i64, tpu.core_type = #tpu.core_type<tc>, window_params = [{transform_indices = @transform_0, window_bounds = array<i64: 1, 4, 128>}, {pipeline_mode = #tpu.pipeline_mode<synchronous>, transform_indices = @transform_1, window_bounds = array<i64: 128, 128>}, {pipeline_mode = #tpu.pipeline_mode<synchronous>, transform_indices = @transform_2, window_bounds = array<i64: 1, 128>}, {pipeline_mode = #tpu.pipeline_mode<synchronous>, transform_indices = @transform_3, window_bounds = array<i64: 1, 128>}, {transform_indices = @transform_4, window_bounds = array<i64: 1, 4, 128>}]} {
    %c0 = arith.constant 0 : index
    %c0_0 = arith.constant 0 : index
    %c0_1 = arith.constant 0 : index
    %0 = vector.load %arg1[%c0, %c0_0, %c0_1] : memref<1x4x128xf32, #tpu.memory_space<vmem>>, vector<1x4x128xf32>
    %1 = vector.shape_cast %0 : vector<1x4x128xf32> to vector<4x128xf32>
    %cst = arith.constant dense<0.000000e+00> : vector<128xf32>
    %2 = vector.multi_reduction <add>, %1, %cst [0] : vector<4x128xf32> to vector<128xf32>
    %3 = vector.shape_cast %2 : vector<128xf32> to vector<1x128xf32>
    %4 = arith.mulf %1, %1 : vector<4x128xf32>
    %cst_2 = arith.constant dense<0.000000e+00> : vector<128xf32>
    %5 = vector.multi_reduction <add>, %4, %cst_2 [0] : vector<4x128xf32> to vector<128xf32>
    %6 = vector.shape_cast %5 : vector<128xf32> to vector<1x128xf32>
    %7 = tpu.concatenate %3, %6 in 0 : vector<1x128xf32>, vector<1x128xf32> -> vector<2x128xf32>
    %c0_3 = arith.constant 0 : index
    %c0_4 = arith.constant 0 : index
    %8 = vector.load %arg2[%c0_3, %c0_4] : memref<128x128xf32, #tpu.memory_space<vmem>>, vector<128x128xf32>
    %cst_5 = arith.constant dense<0.000000e+00> : vector<2x128xf32>
    %9 = tpu.matmul %7, %8, %cst_5 {dimension_numbers = #tpu.dot_dimension_numbers<[1], [0], [0], [1], [0, 0, 1, 1], [], []>} : vector<2x128xf32>, vector<128x128xf32>, vector<2x128xf32> -> vector<2x128xf32>
    %10 = vector.extract_strided_slice %9 {offsets = [0, 0], sizes = [1, 128], strides = [1, 1]} : vector<2x128xf32> to vector<1x128xf32>
    %cst_6 = arith.constant 7.812500e-03 : f32
    %11 = vector.broadcast %cst_6 : f32 to vector<1x128xf32>
    %12 = arith.mulf %10, %11 : vector<1x128xf32>
    %13 = vector.extract_strided_slice %9 {offsets = [1, 0], sizes = [1, 128], strides = [1, 1]} : vector<2x128xf32> to vector<1x128xf32>
    %cst_7 = arith.constant 7.812500e-03 : f32
    %14 = vector.broadcast %cst_7 : f32 to vector<1x128xf32>
    %15 = arith.mulf %13, %14 : vector<1x128xf32>
    %16 = arith.mulf %12, %12 : vector<1x128xf32>
    %17 = arith.subf %15, %16 : vector<1x128xf32>
    %cst_8 = arith.constant 0.000000e+00 : f32
    %18 = vector.broadcast %cst_8 : f32 to vector<1x128xf32>
    %19 = arith.maximumf %17, %18 : vector<1x128xf32>
    %cst_9 = arith.constant 9.99999974E-6 : f32
    %20 = vector.broadcast %cst_9 : f32 to vector<1x128xf32>
    %21 = arith.addf %19, %20 : vector<1x128xf32>
    %22 = math.rsqrt %21 : vector<1x128xf32>
    %c0_10 = arith.constant 0 : index
    %c0_11 = arith.constant 0 : index
    %23 = vector.load %arg3[%c0_10, %c0_11] : memref<1x128xf32, #tpu.memory_space<vmem>>, vector<1x128xf32>
    %24 = arith.mulf %22, %23 : vector<1x128xf32>
    %c0_12 = arith.constant 0 : index
    %c0_13 = arith.constant 0 : index
    %25 = vector.load %arg4[%c0_12, %c0_13] : memref<1x128xf32, #tpu.memory_space<vmem>>, vector<1x128xf32>
    %26 = arith.mulf %12, %24 : vector<1x128xf32>
    %27 = arith.subf %25, %26 : vector<1x128xf32>
    %c0_14 = arith.constant 0 : index
    %c0_15 = arith.constant 0 : index
    %c0_16 = arith.constant 0 : index
    %28 = vector.load %arg1[%c0_14, %c0_15, %c0_16] : memref<1x4x128xf32, #tpu.memory_space<vmem>>, vector<1x4x128xf32>
    %29 = vector.shape_cast %28 : vector<1x4x128xf32> to vector<4x128xf32>
    %30 = vector.broadcast %24 : vector<1x128xf32> to vector<4x128xf32>
    %31 = arith.mulf %29, %30 : vector<4x128xf32>
    %32 = vector.broadcast %27 : vector<1x128xf32> to vector<4x128xf32>
    %33 = arith.addf %31, %32 : vector<4x128xf32>
    %c0_17 = arith.constant 0 : index
    %c0_18 = arith.constant 0 : index
    %c0_19 = arith.constant 0 : index
    %34 = vector.load %arg5[%c0_17, %c0_18, %c0_19] : memref<1x4x128xf32, #tpu.memory_space<vmem>>, vector<1x4x128xf32>
    %35 = vector.shape_cast %34 : vector<1x4x128xf32> to vector<4x128xf32>
    %36 = vector.shape_cast %33 : vector<4x128xf32> to vector<1x4x128xf32>
    tpu.vector_store %arg5[%c0_17, %c0_18, %c0_19], %36 {strides = array<i32>} : memref<1x4x128xf32, #tpu.memory_space<vmem>>, vector<1x4x128xf32>,
    return
  }
  func.func @transform_0(%arg0: i32) -> (i32, i32, i32) {
    %c0_i32 = arith.constant 0 : i32
    %c0_i32_0 = arith.constant 0 : i32
    %c0_i32_1 = arith.constant 0 : i32
    return %arg0, %c0_i32, %c0_i32_0 : i32, i32, i32
  }
  func.func @transform_1(%arg0: i32) -> (i32, i32) {
    %c0_i32 = arith.constant 0 : i32
    %c0_i32_0 = arith.constant 0 : i32
    %c0_i32_1 = arith.constant 0 : i32
    return %c0_i32, %c0_i32_0 : i32, i32
  }
  func.func @transform_2(%arg0: i32) -> (i32, i32) {
    %c0_i32 = arith.constant 0 : i32
    %c0_i32_0 = arith.constant 0 : i32
    %c0_i32_1 = arith.constant 0 : i32
    return %c0_i32, %c0_i32_0 : i32, i32
  }
  func.func @transform_3(%arg0: i32) -> (i32, i32) {
    %c0_i32 = arith.constant 0 : i32
    %c0_i32_0 = arith.constant 0 : i32
    %c0_i32_1 = arith.constant 0 : i32
    return %c0_i32, %c0_i32_0 : i32, i32
  }
  func.func @transform_4(%arg0: i32) -> (i32, i32, i32) {
    %c0_i32 = arith.constant 0 : i32
    %c0_i32_0 = arith.constant 0 : i32
    %c0_i32_1 = arith.constant 0 : i32
    return %arg0, %c0_i32, %c0_i32_0 : i32, i32, i32
  }
}

</mosaic_0001>

<llo_original>
// kernel: tpu_custom_call.1
$region0: #{tpu_custom_call.1}
  #allocation0 [shape = 'u32[]', space=smem, size = 0x4, offset = 0x4, fixed_abs, tag = 'smem constant byte address 0x4 - core index']
  #allocation1 [shape = 'u32[72,128]{1,0:T(1,128)}', space=vmem, size = 0x9000, scoped, tag = 'internal scratch']
  %s0 = inlined_call_operand.hbm [shape: f32[2,4,128], index: 0, kind: input, shape index: {}]
  %s1 = inlined_call_operand.hbm [shape: f32[128,128], index: 1, kind: input, shape index: {}]
  %s2 = inlined_call_operand.vmem [shape: f32[1,128], index: 2, kind: input, shape index: {}]
  %s3 = inlined_call_operand.vmem [shape: f32[1,128], index: 3, kind: input, shape index: {}]
  %s4 = inlined_call_operand.hbm [shape: f32[2,4,128], index: 4, kind: output, shape index: {}]
  %s5 = sld [smem:[#allocation0]]
  $region57: #{tpu_custom_call.1} parent=0
    _
  %s7 = ssub.s32 1, %s5
  %s8 = scalar_select 0, %s7, %s5
  $region1: #{tpu_custom_call.1} parent=0
    #allocation2 [shape = 'u8[4096]{0}', space=vmem, size = 0x1000, scoped, tag = 'input window, operand 0']
    #allocation3 [shape = 's32[2]{0}', space=sflag, size = 0x8, scoped, tag = 'scoped memory for tpu_custom_call.1']
    #allocation4 [shape = 's32[2]{0}', space=sflag, size = 0x8, scoped, tag = 'scoped memory for tpu_custom_call.1']
    #allocation5 [shape = 'u8[65536]{0}', space=vmem, size = 0x10000, scoped, tag = 'input window, operand 1, single buffered']
    #allocation6 [shape = 's32[1]{0}', space=sflag, size = 0x4, scoped, tag = 'scoped memory for tpu_custom_call.1']
    #allocation7 [shape = 'u8[4096]{0}', space=vmem, size = 0x1000, scoped, tag = 'output window, operand 0']
    %9 = vsyncpa [#allocation3], 0
    %s10 = scalar_lea.sflag [#allocation3], 1
    %11 = vsyncpa %s10, 0
    %12 = vsyncpa [#allocation6], 0
    %13 = vsyncpa [#allocation4], 0
    %s14 = scalar_lea.sflag [#allocation4], 1
    %15 = vsyncpa %s14, 0
    loop: start=0, step=1, limit=4
    $region2: #{tpu_custom_call.1} parent=1 // loop_pre_header
      _
    $region3: #{tpu_custom_call.1} parent=1 // loop_header
      %s17 = sphi 0, %s21
      %p18 = scmp.ge.s32.totalorder %s17, 4
      %s27 = sphi 0, %s29
      %s30 = sphi 0, %s27
      %s31 = sphi 0, %s30
      %s47 = sphi 0, %s31
      %s51 = sphi 0, %s51
      %s53 = sphi 0, %s51
      %s54 = sphi 0, %s53
      %s68 = sphi 0, %s54
      %s72 = sphi 0, %s72
      %s74 = sphi 0, %s72
      %s75 = sphi 0, %s74
      %s89 = sphi 0, %s75
      %s93 = sphi 0, %s93
      %s95 = sphi 0, %s93
      %s96 = sphi 0, %s95
      %s110 = sphi 0, %s96
      %s116 = sphi 0, %s118
      %s119 = sphi 0, %s116
      %s120 = sphi 0, %s119
      %s136 = sphi 0, %s120
    $region4: #{tpu_custom_call.1} parent=1 // loop_header_branch
      %20 = sbr.rel (%p18) target = $region8
    $region5: #{tpu_custom_call.1} parent=1 // loop_body
      %s22 = ssub.s32 %s17, 1
      %s23 = ssub.s32 %s17, 2
      %s24 = sadd.s32 %s17, 1
      %s25 = ssub.s32 %s17, %s24
      %p26 = scmp.eq.s32.totalorder %s25, 0
      %s28 = sadd.s32 %s27, 1
      %s29 = scalar_select %p26, %s27, %s28
      %p32 = pneg %p26
      %p33 = scmp.eq.s32.totalorder %s17, 1
      %p34 = por %p32, %p33
      %p35 = scmp.ne.s32.totalorder %s27, %s30
      %p36 = scmp.eq.s32.totalorder %s17, 0
      %p37 = por %p35, %p36
      %p38 = scmp.ne.s32.totalorder %s27, %s30
      %p39 = scmp.eq.s32.totalorder %s22, 1
      %p40 = por %p38, %p39
      %p41 = scmp.ne.s32.totalorder %s30, %s31
      %p42 = scmp.eq.s32.totalorder %s22, 0
      %p43 = por %p41, %p42
      %p44 = scmp.ne.s32.totalorder %s30, %s31
      %p45 = scmp.eq.s32.totalorder %s23, 1
      %p46 = por %p44, %p45
      %p48 = scmp.ne.s32.totalorder %s31, %s47
      %p49 = scmp.eq.s32.totalorder %s23, 0
      %p50 = por %p48, %p49
      %s52 = sadd.s32 %s51, 1
      %p55 = scmp.eq.s32.totalorder %s17, 1
      %p56 = scmp.ne.s32.totalorder %s51, %s53
      %p57 = scmp.eq.s32.totalorder %s17, 0
      %p58 = por %p56, %p57
      %p59 = scmp.ne.s32.totalorder %s51, %s53
      %p60 = scmp.eq.s32.totalorder %s22, 1
      %p61 = por %p59, %p60
      %p62 = scmp.ne.s32.totalorder %s53, %s54
      %p63 = scmp.eq.s32.totalorder %s22, 0
      %p64 = por %p62, %p63
      %p65 = scmp.ne.s32.totalorder %s53, %s54
      %p66 = scmp.eq.s32.totalorder %s23, 1
      %p67 = por %p65, %p66
      %p69 = scmp.ne.s32.totalorder %s54, %s68
      %p70 = scmp.eq.s32.totalorder %s23, 0
      %p71 = por %p69, %p70
      %s73 = sadd.s32 %s72, 1
      %p76 = scmp.eq.s32.totalorder %s17, 1
      %p77 = scmp.ne.s32.totalorder %s72, %s74
      %p78 = scmp.eq.s32.totalorder %s17, 0
      %p79 = por %p77, %p78
      %p80 = scmp.ne.s32.totalorder %s72, %s74
      %p81 = scmp.eq.s32.totalorder %s22, 1
      %p82 = por %p80, %p81
      %p83 = scmp.ne.s32.totalorder %s74, %s75
      %p84 = scmp.eq.s32.totalorder %s22, 0
      %p85 = por %p83, %p84
      %p86 = scmp.ne.s32.totalorder %s74, %s75
      %p87 = scmp.eq.s32.totalorder %s23, 1
      %p88 = por %p86, %p87
      %p90 = scmp.ne.s32.totalorder %s75, %s89
      %p91 = scmp.eq.s32.totalorder %s23, 0
      %p92 = por %p90, %p91
      %s94 = sadd.s32 %s93, 1
      %p97 = scmp.eq.s32.totalorder %s17, 1
      %p98 = scmp.ne.s32.totalorder %s93, %s95
      %p99 = scmp.eq.s32.totalorder %s17, 0
      %p100 = por %p98, %p99
      %p101 = scmp.ne.s32.totalorder %s93, %s95
      %p102 = scmp.eq.s32.totalorder %s22, 1
      %p103 = por %p101, %p102
      %p104 = scmp.ne.s32.totalorder %s95, %s96
      %p105 = scmp.eq.s32.totalorder %s22, 0
      %p106 = por %p104, %p105
      %p107 = scmp.ne.s32.totalorder %s95, %s96
      %p108 = scmp.eq.s32.totalorder %s23, 1
      %p109 = por %p107, %p108
      %p111 = scmp.ne.s32.totalorder %s96, %s110
      %p112 = scmp.eq.s32.totalorder %s23, 0
      %p113 = por %p111, %p112
      %s114 = ssub.s32 %s17, %s24
      %p115 = scmp.eq.s32.totalorder %s114, 0
      %s117 = sadd.s32 %s116, 1
      %s118 = scalar_select %p115, %s116, %s117
      %p121 = pneg %p115
      %p122 = scmp.eq.s32.totalorder %s17, 1
      %p123 = por %p121, %p122
      %p124 = scmp.ne.s32.totalorder %s116, %s119
      %p125 = scmp.eq.s32.totalorder %s17, 0
      %p126 = por %p124, %p125
      %p127 = scmp.ne.s32.totalorder %s116, %s119
      %p128 = scmp.eq.s32.totalorder %s22, 1
      %p129 = por %p127, %p128
      %p130 = scmp.ne.s32.totalorder %s119, %s120
      %p131 = scmp.eq.s32.totalorder %s22, 0
      %p132 = por %p130, %p131
      %p133 = scmp.ne.s32.totalorder %s119, %s120
      %p134 = scmp.eq.s32.totalorder %s23, 1
      %p135 = por %p133, %p134
      %p137 = scmp.ne.s32.totalorder %s120, %s136
      %p138 = scmp.eq.s32.totalorder %s23, 0
      %p139 = por %p137, %p138
      %p140 = scmp.le.s32.totalorder 1, %s17
      %p141 = scmp.lt.s32.totalorder %s17, 3
      %p142 = pnand %p140, %p141
      %p143 = pneg %p142
      // Predicated region
      $region9: #{tpu_custom_call.1} parent=5 // pred_check
        _
      $region10: #{tpu_custom_call.1} parent=5 // pred_check_branch
        %145 = sbr.rel (%p142) target = $region12
      $region11: #{tpu_custom_call.1} parent=5 // pred_region
        %s146 = ssub.s32 %s17, 1
        // Predicated region
        $region13: #{tpu_custom_call.1} parent=11 // pred_check
          %p147 = pneg %p64
        $region14: #{tpu_custom_call.1} parent=11 // pred_check_branch
          %149 = sbr.rel (%p147) target = $region16
        $region15: #{tpu_custom_call.1} parent=11 // pred_region
          %151 = vsyncadd [#allocation6], 0
          %s152 = sshll.u32 %s1, 4
          %s153 = int_to_ptr.hbm [resolvable:$true] %s152
          %s154 = sshll.u32 [#allocation5], 4
          %s155 = int_to_ptr.vmem [resolvable:$true] %s154
          %160 = dma.hbm_to_vmem [thread:$0]  %s153, 2048, %s155, [#allocation6], 128, 128, 8
        $region16: #{tpu_custom_call.1} parent=11 // pred_fallthru
          _
        // Predicated region
        $region17: #{tpu_custom_call.1} parent=11 // pred_check
          %p161 = pneg %p85
        $region18: #{tpu_custom_call.1} parent=11 // pred_check_branch
          %163 = sbr.rel (%p161) target = $region20
        $region19: #{tpu_custom_call.1} parent=11 // pred_region
          _
        $region20: #{tpu_custom_call.1} parent=11 // pred_fallthru
          _
        // Predicated region
        $region21: #{tpu_custom_call.1} parent=11 // pred_check
          %p164 = pneg %p106
        $region22: #{tpu_custom_call.1} parent=11 // pred_check_branch
          %166 = sbr.rel (%p164) target = $region24
        $region23: #{tpu_custom_call.1} parent=11 // pred_region
          _
        $region24: #{tpu_custom_call.1} parent=11 // pred_fallthru
          _
      $region12: #{tpu_custom_call.1} parent=5 // pred_fallthru
        _
      %p167 = scmp.lt.s32.totalorder %s17, 2
      // Predicated region
      $region25: #{tpu_custom_call.1} parent=5 // pred_check
        %p168 = pneg %p167
      $region26: #{tpu_custom_call.1} parent=5 // pred_check_branch
        %170 = sbr.rel (%p168) target = $region28
      $region27: #{tpu_custom_call.1} parent=5 // pred_region
        // Predicated region
        $region29: #{tpu_custom_call.1} parent=27 // pred_check
          %p171 = pneg %p37
        $region30: #{tpu_custom_call.1} parent=27 // pred_check_branch
          %173 = sbr.rel (%p171) target = $region32
        $region31: #{tpu_custom_call.1} parent=27 // pred_region
          %s174 = sand.u32 %s27, 1
          %s175 = scalar_lea.sflag [#allocation3], %s174
          %s176 = sand.u32 %s27, 1
          %s177 = smul.addr %s176, 4
          %s178 = scalar_lea.vmem [#allocation2], %s177
          %180 = vsyncadd %s175, 0
          %s181 = smul.addr %s17, 4
          %s182 = scalar_lea.hbm %s0, %s181
          %s184 = sshll.u32 %s182, 4
          %s185 = int_to_ptr.hbm [resolvable:$true] %s184
          %s186 = sshll.u32 %s178, 4
          %s187 = int_to_ptr.vmem [resolvable:$true] %s186
          %189 = dma.hbm_to_vmem [thread:$0]  %s185, 64, %s187, %s175
        $region32: #{tpu_custom_call.1} parent=27 // pred_fallthru
          _
      $region28: #{tpu_custom_call.1} parent=5 // pred_fallthru
        _
      %p190 = scmp.le.s32.totalorder 1, %s17
      %p191 = scmp.lt.s32.totalorder %s17, 3
      %p192 = pnand %p190, %p191
      %p193 = pneg %p192
      // Predicated region
      $region33: #{tpu_custom_call.1} parent=5 // pred_check
        _
      $region34: #{tpu_custom_call.1} parent=5 // pred_check_branch
        %195 = sbr.rel (%p192) target = $region36
      $region35: #{tpu_custom_call.1} parent=5 // pred_region
        %s196 = ssub.s32 %s17, 1
        %s197 = sand.u32 %s30, 1
        %s198 = scalar_lea.sflag [#allocation3], %s197
        %s199 = sand.u32 %s30, 1
        %s200 = smul.addr %s199, 4
        %s201 = scalar_lea.vmem [#allocation2], %s200
        // Predicated region
        $region37: #{tpu_custom_call.1} parent=35 // pred_check
          %p202 = pneg %p43
        $region38: #{tpu_custom_call.1} parent=35 // pred_check_branch
          %204 = sbr.rel (%p202) target = $region40
        $region39: #{tpu_custom_call.1} parent=35 // pred_region
          %206 = dma.done %s198, 64
        $region40: #{tpu_custom_call.1} parent=35 // pred_fallthru
          _
        // Predicated region
        $region41: #{tpu_custom_call.1} parent=35 // pred_check
          %p207 = pneg %p64
        $region42: #{tpu_custom_call.1} parent=35 // pred_check_branch
          %209 = sbr.rel (%p207) target = $region44
        $region43: #{tpu_custom_call.1} parent=35 // pred_region
          %211 = dma.done [#allocation6], 2048
        $region44: #{tpu_custom_call.1} parent=35 // pred_fallthru
          _
        %s212 = sand.u32 %s30, 1
        %s213 = scalar_lea.sflag [#allocation3], %s212
        %s214 = sand.u32 %s30, 1
        %s215 = smul.addr %s214, 4
        %s216 = scalar_lea.vmem [#allocation2], %s215
        %p217 = pneg %p43
        %p218 = pneg %p40
        %p219 = pneg %p64
        %p220 = pneg %p61
        %p221 = pneg %p85
        %p222 = pneg %p82
        %p223 = pneg %p106
        %p224 = pneg %p103
        %p225 = pneg %p132
        %p226 = pneg %p129
        %s227 = sand.u32 %s119, 1
        %s228 = scalar_lea.sflag [#allocation4], %s227
        %s229 = sand.u32 %s119, 1
        %s230 = smul.addr %s229, 4
        %s231 = scalar_lea.vmem [#allocation7], %s230
        %v232 = vld [vmem:[%s201] sm:$0xf]
        %vm233 = vcmask 1043456
        %v234 = vsel %vm233, %v232, 0.0
        %v235 = vrot.slane %v234, 4
        %v236 = vadd.f32 %v234, %v235
        %v237 = vrot.slane %v236, 2
        %v238 = vadd.f32 %v236, %v237
        %v239 = vrot.slane %v238, 1
        %v240 = vadd.f32 %v238, %v239
        %v241 = vmul.f32 %v232, %v232
        %v242 = vsel %vm233, %v241, 0.0
        %v243 = vrot.slane %v242, 4
        %v244 = vadd.f32 %v242, %v243
        %v245 = vrot.slane %v244, 2
        %v246 = vadd.f32 %v244, %v245
        %v247 = vrot.slane %v246, 1
        %v248 = vadd.f32 %v246, %v247
        %vm249 = vcmask 1040384
        %v250 = vsel %vm249, %v240, %v248
        %v251 = vld [vmem:[#allocation5] sm:$0xff]
        %v252 = vld [vmem:[#allocation5 + $0x8] sm:$0xff]
        %v253 = vld [vmem:[#allocation5 + $0x10] sm:$0xff]
        %v254 = vld [vmem:[#allocation5 + $0x18] sm:$0xff]
        %v255 = vld [vmem:[#allocation5 + $0x20] sm:$0xff]
        %v256 = vld [vmem:[#allocation5 + $0x28] sm:$0xff]
        %v257 = vld [vmem:[#allocation5 + $0x30] sm:$0xff]
        %v258 = vld [vmem:[#allocation5 + $0x38] sm:$0xff]
        %v259 = vld [vmem:[#allocation5 + $0x40] sm:$0xff]
        %v260 = vld [vmem:[#allocation5 + $0x48] sm:$0xff]
        %v261 = vld [vmem:[#allocation5 + $0x50] sm:$0xff]
        %v262 = vld [vmem:[#allocation5 + $0x58] sm:$0xff]
        %v263 = vld [vmem:[#allocation5 + $0x60] sm:$0xff]
        %v264 = vld [vmem:[#allocation5 + $0x68] sm:$0xff]
        %v265 = vld [vmem:[#allocation5 + $0x70] sm:$0xff]
        %v266 = vld [vmem:[#allocation5 + $0x78] sm:$0xff]
        %267 = vmatpush.msra.mxu0 %v266
        %268 = vmatpush.msra.mxu0 %v265
        %269 = vmatpush.msra.mxu0 %v264
        %270 = vmatpush.msra.mxu0 %v263
        %271 = vmatpush.msra.mxu0 %v262
        %272 = vmatpush.msra.mxu0 %v261
        %273 = vmatpush.msra.mxu0 %v260
        %274 = vmatpush.msra.mxu0 %v259
        %275 = vmatpush.msra.mxu0 %v258
        %276 = vmatpush.msra.mxu0 %v257
        %277 = vmatpush.msra.mxu0 %v256
        %278 = vmatpush.msra.mxu0 %v255
        %279 = vmatpush.msra.mxu0 %v254
        %280 = vmatpush.msra.mxu0 %v253
        %281 = vmatpush.msra.mxu0 %v252
        %282 = vmatpush.msra.mxu0 %v251
        %283 = vmatmul.f32.gmra.mxu0 %v250
        %v284 = vpop.f32.mrf.mxu0
        %v285 = vadd.f32 0.0, %v284
        %286 = vdwg.mxu0
        %v287 = vmul.f32 %v285, 0.0078125
        %v288 = vmul.f32 %v287, %v287
        %v290 = vrot.slane %v288, 7
        %v292 = vsub.f32 %v287, %v290
        %v293 = vmax.f32 %v292, 0.0
        %v294 = vadd.f32 %v293, 1e-05
        %v295 = vrsqrt.pop %v294
        %v296 = vmul.f32 %v295, %v294
        %v297 = vmul.f32 %v296, %v295
        %v298 = vmul.f32 0.5, %v297
        %v299 = vsub.f32 1.5, %v298
        %v300 = vmul.f32 %v295, %v299
        %vm301 = vweird.f32 %v294
        %vm302 = vweird.f32 %v295
        %vm303 = vmor %vm301, %vm302
        %v304 = vsel %vm303, %v295, %v300
        %v305 = vld [vmem:[%s2] sm:$0x1]
        %v307 = vperm.slane %v305, 0
        %v309 = vmul.f32 %v304, %v307
        %v310 = vld [vmem:[%s3] sm:$0x1]
        %v312 = vrot.slane %v309, 1
        %v314 = vmul.f32 %v287, %v312
        %v315 = vsub.f32 %v310, %v314
        %v316 = vperm.slane %v309, 1
        %v317 = vmul.f32 %v232, %v316
        %v319 = vperm.slane %v315, 0
        %v321 = vadd.f32 %v317, %v319
        %322 = vst [vmem:[%s231] sm:$0xf] %v321
        %s323 = sand.u32 %s119, 1
        %s324 = scalar_lea.sflag [#allocation4], %s323
        %s325 = sand.u32 %s119, 1
        %s326 = smul.addr %s325, 4
        %s327 = scalar_lea.vmem [#allocation7], %s326
        // Predicated region
        $region45: #{tpu_custom_call.1} parent=35 // pred_check
          %p328 = pneg %p129
        $region46: #{tpu_custom_call.1} parent=35 // pred_check_branch
          %330 = sbr.rel (%p328) target = $region48
        $region47: #{tpu_custom_call.1} parent=35 // pred_region
          %332 = vsyncadd %s324, 0
          %s333 = smul.addr %s22, 4
          %s334 = scalar_lea.hbm %s4, %s333
          %s336 = sshll.u32 %s327, 4
          %s337 = int_to_ptr.vmem [resolvable:$true] %s336
          %s338 = sshll.u32 %s334, 4
          %s339 = int_to_ptr.hbm [resolvable:$true] %s338
          %341 = dma.vmem_to_hbm [thread:$0]  %s337, 64, %s339, %s324
        $region48: #{tpu_custom_call.1} parent=35 // pred_fallthru
          _
      $region36: #{tpu_custom_call.1} parent=5 // pred_fallthru
        _
      %p342 = scmp.le.s32.totalorder 2, %s17
      // Predicated region
      $region49: #{tpu_custom_call.1} parent=5 // pred_check
        %p343 = pneg %p342
      $region50: #{tpu_custom_call.1} parent=5 // pred_check_branch
        %345 = sbr.rel (%p343) target = $region52
      $region51: #{tpu_custom_call.1} parent=5 // pred_region
        %s346 = ssub.s32 %s17, 2
        // Predicated region
        $region53: #{tpu_custom_call.1} parent=51 // pred_check
          %p347 = pneg %p135
        $region54: #{tpu_custom_call.1} parent=51 // pred_check_branch
          %349 = sbr.rel (%p347) target = $region56
        $region55: #{tpu_custom_call.1} parent=51 // pred_region
          %s350 = sand.u32 %s120, 1
          %s351 = scalar_lea.sflag [#allocation4], %s350
          %s352 = sand.u32 %s120, 1
          %s353 = smul.addr %s352, 4
          %s354 = scalar_lea.vmem [#allocation7], %s353
          %356 = dma.done %s351, 64
        $region56: #{tpu_custom_call.1} parent=51 // pred_fallthru
          _
      $region52: #{tpu_custom_call.1} parent=5 // pred_fallthru
        _
    $region6: #{tpu_custom_call.1} parent=1 // loop_footer
      %s21 = sadd.s32 1, %s17
    $region7: #{tpu_custom_call.1} parent=1 // loop_footer_branch
      %16 = sbr.rel target = $region3
    $region8: #{tpu_custom_call.1} parent=1 // loop_exit
      _
    %357 = vsyncpa [#allocation3], 1
    %s358 = scalar_lea.sflag [#allocation3], 1
    %359 = vsyncpa %s358, 1
    %360 = vsyncpa [#allocation6], 1
    %361 = vsyncpa [#allocation4], 1
    %s362 = scalar_lea.sflag [#allocation4], 1
    %363 = vsyncpa %s362, 1

</llo_original>
